<compile_context>
chip_gen: v7x
topology: tpu7x:2x2x1
jax: 0.10.0
libtpu: 0.0.40
codegen_flags: <defaults>
</compile_context>

<pallas_src>
import jax
import jax.numpy as jnp
from jax.experimental import pallas as pl
from jax.experimental.pallas import tpu as pltpu

IN_FEATURES = 16   # stand-in for X_train.shape[1]
H1 = 128
H2 = 64
OUT = 1


def mlp_kernel(x_ref, w1_ref, b1_ref, w2_ref, b2_ref, w3_ref, b3_ref, o_ref):
    # fc1 + relu in f32 (K=16 -> negligible MXU cost, best numerical parity)
    h1 = jnp.dot(x_ref[...], w1_ref[...], preferred_element_type=jnp.float32) + b1_ref[...]
    h1 = jnp.maximum(h1, 0.0)
    # fc2 + relu: bf16 MXU inputs, f32 accumulation; bias/relu stay in f32 (v5e-safe VPU math)
    h2 = jnp.dot(h1.astype(jnp.bfloat16), w2_ref[...],
                 preferred_element_type=jnp.float32) + b2_ref[...]
    h2 = jnp.maximum(h2, 0.0)
    # fc3 on the VPU/XLU: only 1 useful output column, so skip the MXU entirely.
    # (tile_b, 64) * (1, 64) -> cross-lane reduce -> (tile_b, 1)
    y = jnp.sum(h2 * w3_ref[...], axis=-1, keepdims=True) + b3_ref[...]
    o_ref[...] = y.astype(o_ref.dtype)


def _round_up(n, m):
    return ((n + m - 1) // m) * m


def prepare_params(params):
    """One-time pre-pack: cast the 128-wide fc2 layer to bf16, repack fc3 as a row vector."""
    w1, b1, w2, b2, w3, b3 = params
    w2_bf = w2.astype(jnp.bfloat16)            # (H1, H2) bf16 MXU operand
    w3_row = w3.reshape(1, H2).astype(jnp.float32)   # (1, H2) for the VPU multiply-reduce
    b3_s = b3.reshape(1, 1).astype(jnp.float32)      # scalar bias as (1, 1)
    return (w1.astype(jnp.float32), b1.astype(jnp.float32),
            w2_bf, b2.astype(jnp.float32), w3_row, b3_s)


def car_price_predictor(x, packed_params, *, tile_b=None):
    """x: (B, IN_FEATURES) f32; packed_params from prepare_params. Returns (B, 1) f32."""
    w1, b1, w2_bf, b2, w3_row, b3_s = packed_params
    B, F = x.shape
    assert F == IN_FEATURES

    # --- batch tiling: large tiles amortize the ~0.35us per-grid-step cost; cap at 2048
    #     and keep >= 2 grid steps when B allows so v7x can use both TensorCores. ---
    if tile_b is None:
        tile_b = min(2048, max(16, _round_up(pl.cdiv(B, 2), 16)))
    Bp = _round_up(B, tile_b)
    x_p = x.astype(jnp.float32)
    if Bp != B:
        x_p = jnp.pad(x_p, ((0, Bp - B), (0, 0)))

    # --- explicit VMEM budget (v7x scoped default is 32 MiB of a 64 MiB chip) ---
    f32, bf16, lane = 4, 2, 128
    est = (
        2 * tile_b * IN_FEATURES * f32      # double-buffered x tiles
        + 2 * tile_b * lane * f32           # double-buffered (tile_b,1) out tiles (lane-padded in VMEM)
        + 2 * (IN_FEATURES * H1 * f32 + H1 * f32 + H1 * lane * bf16 + 3 * lane * f32)  # resident weights
        + 3 * tile_b * H1 * f32             # h1/h2 intermediates headroom
    )
    vmem_limit = int(min(32 << 20, max(16 << 20, 2 * est)))

    out = pl.pallas_call(
        mlp_kernel,
        out_shape=jax.ShapeDtypeStruct((Bp, OUT), jnp.float32),
        grid=(Bp // tile_b,),
        in_specs=[
            pl.BlockSpec((tile_b, IN_FEATURES), lambda i: (i, 0)),   # x: tiled over batch
            pl.BlockSpec((IN_FEATURES, H1),     lambda i: (0, 0)),   # weights/biases resident
            pl.BlockSpec((1, H1),               lambda i: (0, 0)),
            pl.BlockSpec((H1, H2),              lambda i: (0, 0)),
            pl.BlockSpec((1, H2),               lambda i: (0, 0)),
            pl.BlockSpec((1, H2),               lambda i: (0, 0)),   # fc3 row vector
            pl.BlockSpec((1, 1),                lambda i: (0, 0)),   # fc3 bias
        ],
        out_specs=pl.BlockSpec((tile_b, OUT), lambda i: (i, 0)),     # true (B,1) output, no 128x padding
        compiler_params=pltpu.CompilerParams(
            dimension_semantics=("parallel",),
            vmem_limit_bytes=vmem_limit,
        ),
    )(x_p, w1, b1, w2_bf, b2, w3_row, b3_s)

    return out[:B, :]


def init_params(key):
    # Deterministic init mimicking PyTorch's default Linear init: U(-1/sqrt(fan_in), 1/sqrt(fan_in)).
    ks = jax.random.split(key, 6)

    def linear(kw, kb, fan_in, fan_out):
        bound = 1.0 / jnp.sqrt(fan_in)
        w = jax.random.uniform(kw, (fan_in, fan_out), jnp.float32, -bound, bound)
        b = jax.random.uniform(kb, (1, fan_out), jnp.float32, -bound, bound)
        return w, b

    w1, b1 = linear(ks[0], ks[1], IN_FEATURES, H1)
    w2, b2 = linear(ks[2], ks[3], H1, H2)
    w3, b3 = linear(ks[4], ks[5], H2, OUT)
    return (w1, b1, w2, b2, w3, b3)


if __name__ == "__main__":
    key = jax.random.PRNGKey(0)
    k_x, k_p = jax.random.split(key)

    B = 8
    x = jax.random.normal(k_x, (B, IN_FEATURES), jnp.float32)  # standardized features
    params = init_params(k_p)
    packed = prepare_params(params)   # one-time pre-pack (hoisted out of the hot path)

    out = car_price_predictor(x, packed)
    jax.block_until_ready(out)

    # Reference check in plain JAX f32 (only fc2 uses bf16 MXU inputs -> modest tolerance).
    w1, b1, w2, b2, w3, b3 = params
    ref = jnp.maximum(x @ w1 + b1, 0.0)
    ref = jnp.maximum(ref @ w2 + b2, 0.0)
    ref = ref @ w3 + b3
    assert out.shape == (B, OUT)
    assert jnp.allclose(out, ref, atol=2e-2, rtol=2e-2), (out, ref)

    print("KERNEL_OK")
</pallas_src>

<mosaic_0001>
module attributes {stable_mosaic.version = 11 : i64} {
  func.func @mlp_kernel(%arg0: i32, %arg1: memref<16x16xf32, #tpu.memory_space<vmem>>, %arg2: memref<16x128xf32, #tpu.memory_space<vmem>>, %arg3: memref<1x128xf32, #tpu.memory_space<vmem>>, %arg4: memref<128x64xbf16, #tpu.memory_space<vmem>>, %arg5: memref<1x64xf32, #tpu.memory_space<vmem>>, %arg6: memref<1x64xf32, #tpu.memory_space<vmem>>, %arg7: memref<1x1xf32, #tpu.memory_space<vmem>>, %arg8: memref<16x1xf32, #tpu.memory_space<vmem>>) attributes {dimension_semantics = [#tpu.dimension_semantics<parallel>], iteration_bounds = array<i64: 1>, scalar_prefetch = 0 : i64, scratch_operands = 0 : i64, tpu.core_type = #tpu.core_type<tc>, window_params = [{transform_indices = @transform_0, window_bounds = array<i64: 16, 16>}, {pipeline_mode = #tpu.pipeline_mode<synchronous>, transform_indices = @transform_1, window_bounds = array<i64: 16, 128>}, {pipeline_mode = #tpu.pipeline_mode<synchronous>, transform_indices = @transform_2, window_bounds = array<i64: 1, 128>}, {pipeline_mode = #tpu.pipeline_mode<synchronous>, transform_indices = @transform_3, window_bounds = array<i64: 128, 64>}, {pipeline_mode = #tpu.pipeline_mode<synchronous>, transform_indices = @transform_4, window_bounds = array<i64: 1, 64>}, {pipeline_mode = #tpu.pipeline_mode<synchronous>, transform_indices = @transform_5, window_bounds = array<i64: 1, 64>}, {pipeline_mode = #tpu.pipeline_mode<synchronous>, transform_indices = @transform_6, window_bounds = array<i64: 1, 1>}, {transform_indices = @transform_7, window_bounds = array<i64: 16, 1>}]} {
    %c0 = arith.constant 0 : index
    %c0_0 = arith.constant 0 : index
    %0 = vector.load %arg1[%c0, %c0_0] : memref<16x16xf32, #tpu.memory_space<vmem>>, vector<16x16xf32>
    %c0_1 = arith.constant 0 : index
    %c0_2 = arith.constant 0 : index
    %1 = vector.load %arg2[%c0_1, %c0_2] : memref<16x128xf32, #tpu.memory_space<vmem>>, vector<16x128xf32>
    %cst = arith.constant dense<0.000000e+00> : vector<16x128xf32>
    %2 = tpu.matmul %0, %1, %cst {dimension_numbers = #tpu.dot_dimension_numbers<[1], [0], [0], [1], [0, 0, 1, 1], [], []>} : vector<16x16xf32>, vector<16x128xf32>, vector<16x128xf32> -> vector<16x128xf32>
    %c0_3 = arith.constant 0 : index
    %c0_4 = arith.constant 0 : index
    %3 = vector.load %arg3[%c0_3, %c0_4] : memref<1x128xf32, #tpu.memory_space<vmem>>, vector<1x128xf32>
    %4 = vector.broadcast %3 : vector<1x128xf32> to vector<16x128xf32>
    %5 = arith.addf %2, %4 : vector<16x128xf32>
    %cst_5 = arith.constant 0.000000e+00 : f32
    %6 = vector.broadcast %cst_5 : f32 to vector<16x128xf32>
    %7 = arith.maximumf %5, %6 : vector<16x128xf32>
    %8 = arith.truncf %7 : vector<16x128xf32> to vector<16x128xbf16>
    %c0_6 = arith.constant 0 : index
    %c0_7 = arith.constant 0 : index
    %9 = vector.load %arg4[%c0_6, %c0_7] : memref<128x64xbf16, #tpu.memory_space<vmem>>, vector<128x64xbf16>
    %cst_8 = arith.constant dense<0.000000e+00> : vector<16x64xf32>
    %10 = tpu.matmul %8, %9, %cst_8 {dimension_numbers = #tpu.dot_dimension_numbers<[1], [0], [0], [1], [0, 0, 1, 1], [], []>} : vector<16x128xbf16>, vector<128x64xbf16>, vector<16x64xf32> -> vector<16x64xf32>
    %c0_9 = arith.constant 0 : index
    %c0_10 = arith.constant 0 : index
    %11 = vector.load %arg5[%c0_9, %c0_10] : memref<1x64xf32, #tpu.memory_space<vmem>>, vector<1x64xf32>
    %12 = vector.broadcast %11 : vector<1x64xf32> to vector<16x64xf32>
    %13 = arith.addf %10, %12 : vector<16x64xf32>
    %cst_11 = arith.constant 0.000000e+00 : f32
    %14 = vector.broadcast %cst_11 : f32 to vector<16x64xf32>
    %15 = arith.maximumf %13, %14 : vector<16x64xf32>
    %c0_12 = arith.constant 0 : index
    %c0_13 = arith.constant 0 : index
    %16 = vector.load %arg6[%c0_12, %c0_13] : memref<1x64xf32, #tpu.memory_space<vmem>>, vector<1x64xf32>
    %17 = vector.broadcast %16 : vector<1x64xf32> to vector<16x64xf32>
    %18 = arith.mulf %15, %17 : vector<16x64xf32>
    %cst_14 = arith.constant dense<0.000000e+00> : vector<16xf32>
    %19 = vector.multi_reduction <add>, %18, %cst_14 [1] : vector<16x64xf32> to vector<16xf32>
    %20 = vector.shape_cast %19 : vector<16xf32> to vector<16x1xf32>
    %c0_15 = arith.constant 0 : index
    %c0_16 = arith.constant 0 : index
    %21 = vector.load %arg7[%c0_15, %c0_16] : memref<1x1xf32, #tpu.memory_space<vmem>>, vector<1x1xf32>
    %22 = vector.broadcast %21 : vector<1x1xf32> to vector<16x1xf32>
    %23 = arith.addf %20, %22 : vector<16x1xf32>
    %c0_17 = arith.constant 0 : index
    %c0_18 = arith.constant 0 : index
    %24 = vector.load %arg8[%c0_17, %c0_18] : memref<16x1xf32, #tpu.memory_space<vmem>>, vector<16x1xf32>
    tpu.vector_store %arg8[%c0_17, %c0_18], %23 {strides = array<i32>} : memref<16x1xf32, #tpu.memory_space<vmem>>, vector<16x1xf32>,
    return
  }
  func.func @transform_0(%arg0: i32) -> (i32, i32) {
    %c0_i32 = arith.constant 0 : i32
    %c0_i32_0 = arith.constant 0 : i32
    return %arg0, %c0_i32 : i32, i32
  }
  func.func @transform_1(%arg0: i32) -> (i32, i32) {
    %c0_i32 = arith.constant 0 : i32
    %c0_i32_0 = arith.constant 0 : i32
    %c0_i32_1 = arith.constant 0 : i32
    return %c0_i32, %c0_i32_0 : i32, i32
  }
  func.func @transform_2(%arg0: i32) -> (i32, i32) {
    %c0_i32 = arith.constant 0 : i32
    %c0_i32_0 = arith.constant 0 : i32
    %c0_i32_1 = arith.constant 0 : i32
    return %c0_i32, %c0_i32_0 : i32, i32
  }
  func.func @transform_3(%arg0: i32) -> (i32, i32) {
    %c0_i32 = arith.constant 0 : i32
    %c0_i32_0 = arith.constant 0 : i32
    %c0_i32_1 = arith.constant 0 : i32
    return %c0_i32, %c0_i32_0 : i32, i32
  }
  func.func @transform_4(%arg0: i32) -> (i32, i32) {
    %c0_i32 = arith.constant 0 : i32
    %c0_i32_0 = arith.constant 0 : i32
    %c0_i32_1 = arith.constant 0 : i32
    return %c0_i32, %c0_i32_0 : i32, i32
  }
  func.func @transform_5(%arg0: i32) -> (i32, i32) {
    %c0_i32 = arith.constant 0 : i32
    %c0_i32_0 = arith.constant 0 : i32
    %c0_i32_1 = arith.constant 0 : i32
    return %c0_i32, %c0_i32_0 : i32, i32
  }
  func.func @transform_6(%arg0: i32) -> (i32, i32) {
    %c0_i32 = arith.constant 0 : i32
    %c0_i32_0 = arith.constant 0 : i32
    %c0_i32_1 = arith.constant 0 : i32
    return %c0_i32, %c0_i32_0 : i32, i32
  }
  func.func @transform_7(%arg0: i32) -> (i32, i32) {
    %c0_i32 = arith.constant 0 : i32
    %c0_i32_0 = arith.constant 0 : i32
    return %arg0, %c0_i32 : i32, i32
  }
}

</mosaic_0001>

<llo_original>
// kernel: tpu_custom_call.1
$region0: #{tpu_custom_call.1}
  #allocation0 [shape = 'u32[]', space=smem, size = 0x4, offset = 0x4, fixed_abs, tag = 'smem constant byte address 0x4 - core index']
  #allocation1 [shape = 'u32[144,128]{1,0:T(1,128)}', space=vmem, size = 0x12000, scoped, tag = 'internal scratch']
  #allocation2 [shape = 'f32[1,1]{1,0:T(1,128)S(1)}', space=vmem, size = 0x200, scoped, tag = 'scoped memory for tpu_custom_call.1']
  %s0 = inlined_call_operand.vmem [shape: f32[16,16], index: 0, kind: input, shape index: {}]
  %s1 = inlined_call_operand.vmem [shape: f32[16,128], index: 1, kind: input, shape index: {}]
  %s2 = inlined_call_operand.vmem [shape: f32[1,128], index: 2, kind: input, shape index: {}]
  %s3 = inlined_call_operand.vmem [shape: bf16[128,64], index: 3, kind: input, shape index: {}]
  %s4 = inlined_call_operand.vmem [shape: f32[1,64], index: 4, kind: input, shape index: {}]
  %s5 = inlined_call_operand.vmem [shape: f32[1,64], index: 5, kind: input, shape index: {}]
  %s6 = inlined_call_operand.<no memory space> [shape: f32[1,1], index: 6, kind: input, shape index: {}]
  %s7 = inlined_call_operand.vmem [shape: f32[16,1], index: 7, kind: output, shape index: {}]
  %s8 = sld [smem:[#allocation0]]
  $region38: #{tpu_custom_call.1} parent=0
    _
  %s10 = ssub.s32 1, %s8
  %s11 = scalar_select 0, %s10, %s8
  %v12 = vstv %s6
  %13 = vst [vmem:[#allocation2] sm:$0x1] %v12
  // Predicated region
  $region2: #{tpu_custom_call.1} parent=0 // pred_check
    _
  $region3: #{tpu_custom_call.1} parent=0 // pred_check_branch
    %15 = sbr.rel (0) target = $region5
  $region4: #{tpu_custom_call.1} parent=0 // pred_region
    _
  $region5: #{tpu_custom_call.1} parent=0 // pred_fallthru
    _
  // Predicated region
  $region6: #{tpu_custom_call.1} parent=0 // pred_check
    _
  $region7: #{tpu_custom_call.1} parent=0 // pred_check_branch
    %17 = sbr.rel (0) target = $region9
  $region8: #{tpu_custom_call.1} parent=0 // pred_region
    _
  $region9: #{tpu_custom_call.1} parent=0 // pred_fallthru
    _
  // Predicated region
  $region10: #{tpu_custom_call.1} parent=0 // pred_check
    _
  $region11: #{tpu_custom_call.1} parent=0 // pred_check_branch
    %19 = sbr.rel (0) target = $region13
  $region12: #{tpu_custom_call.1} parent=0 // pred_region
    _
  $region13: #{tpu_custom_call.1} parent=0 // pred_fallthru
    _
  // Predicated region
  $region14: #{tpu_custom_call.1} parent=0 // pred_check
    _
  $region15: #{tpu_custom_call.1} parent=0 // pred_check_branch
    %21 = sbr.rel (0) target = $region17
  $region16: #{tpu_custom_call.1} parent=0 // pred_region
    _
  $region17: #{tpu_custom_call.1} parent=0 // pred_fallthru
    _
  // Predicated region
  $region18: #{tpu_custom_call.1} parent=0 // pred_check
    _
  $region19: #{tpu_custom_call.1} parent=0 // pred_check_branch
    %23 = sbr.rel (0) target = $region21
  $region20: #{tpu_custom_call.1} parent=0 // pred_region
    _
  $region21: #{tpu_custom_call.1} parent=0 // pred_fallthru
    _
  // Predicated region
  $region22: #{tpu_custom_call.1} parent=0 // pred_check
    _
  $region23: #{tpu_custom_call.1} parent=0 // pred_check_branch
    %25 = sbr.rel (0) target = $region25
  $region24: #{tpu_custom_call.1} parent=0 // pred_region
    _
  $region25: #{tpu_custom_call.1} parent=0 // pred_fallthru
    _
  // Predicated region
  $region26: #{tpu_custom_call.1} parent=0 // pred_check
    _
  $region27: #{tpu_custom_call.1} parent=0 // pred_check_branch
    %27 = sbr.rel (0) target = $region29
  $region28: #{tpu_custom_call.1} parent=0 // pred_region
    _
  $region29: #{tpu_custom_call.1} parent=0 // pred_fallthru
    _
  %v29 = vld [vmem:[%s0] sm:$0xff]
  %v30 = vld [vmem:[%s0 + $0x8] sm:$0xff]
  %v31 = vld [vmem:[%s1] sm:$0xff]
  %v32 = vld [vmem:[%s1 + $0x8] sm:$0xff]
  %v33 = vld [vmem:[%s2] sm:$0x1]
  %v35 = vlaneseq
  %v36 = vshrl.u32 %v35, 7
  %v37 = vsub.s32 0, %v36
  %v38 = vrot.slane %v33, %v37
  %vm40 = vcmask 130048
  %v42 = vsel %vm40, %v29, 0
  %v45 = vsel %vm40, %v30, 0
  %47 = vmatprep.subr.mxu0 0.0
  %48 = vmatpush1.msra.mxu0 %v31
  %49 = vmatprep.subr.mxu0 0.0
  %50 = vmatpush1.msra.mxu0 %v32
  %51 = vmatprep.subr.mxu0 0.0
  %52 = vmatpush1.msra.mxu0 0.0
  %53 = vmatprep.subr.mxu0 0.0
  %54 = vmatpush1.msra.mxu0 0.0
  %55 = vmatprep.subr.mxu0 0.0
  %56 = vmatpush1.msra.mxu0 0.0
  %57 = vmatprep.subr.mxu0 0.0
  %58 = vmatpush1.msra.mxu0 0.0
  %59 = vmatprep.subr.mxu0 0.0
  %60 = vmatpush1.msra.mxu0 0.0
  %61 = vmatprep.subr.mxu0 0.0
  %62 = vmatpush1.msra.mxu0 0.0
  %63 = vmatprep.subr.mxu0 0.0
  %64 = vmatpush1.msra.mxu0 0.0
  %65 = vmatprep.subr.mxu0 0.0
  %66 = vmatpush1.msra.mxu0 0.0
  %67 = vmatprep.subr.mxu0 0.0
  %68 = vmatpush1.msra.mxu0 0.0
  %69 = vmatprep.subr.mxu0 0.0
  %70 = vmatpush1.msra.mxu0 0.0
  %71 = vmatprep.subr.mxu0 0.0
  %72 = vmatpush1.msra.mxu0 0.0
  %73 = vmatprep.subr.mxu0 0.0
  %74 = vmatpush1.msra.mxu0 0.0
  %75 = vmatprep.subr.mxu0 0.0
  %76 = vmatpush1.msra.mxu0 0.0
  %77 = vmatprep.subr.mxu0 0.0
  %78 = vmatpush1.msra.mxu0 0.0
  %79 = vmatprep.subr.mxu0 0.0
  %80 = vmatpush1.msra.mxu0 0.0
  %81 = vmatprep.subr.mxu0 0.0
  %82 = vmatpush1.msra.mxu0 0.0
  %83 = vmatprep.subr.mxu0 0.0
  %84 = vmatpush1.msra.mxu0 0.0
  %85 = vmatprep.subr.mxu0 0.0
  %86 = vmatpush1.msra.mxu0 0.0
  %87 = vmatprep.subr.mxu0 0.0
  %88 = vmatpush1.msra.mxu0 0.0
  %89 = vmatprep.subr.mxu0 0.0
  %90 = vmatpush1.msra.mxu0 0.0
  %91 = vmatprep.subr.mxu0 0.0
  %92 = vmatpush1.msra.mxu0 0.0
  %93 = vmatprep.subr.mxu0 0.0
  %94 = vmatpush1.msra.mxu0 0.0
  %95 = vmatprep.subr.mxu0 0.0
  %96 = vmatpush1.msra.mxu0 0.0
  %97 = vmatprep.subr.mxu0 0.0
  %98 = vmatpush1.msra.mxu0 0.0
  %99 = vmatprep.subr.mxu0 0.0
  %100 = vmatpush1.msra.mxu0 0.0
  %101 = vmatprep.subr.mxu0 0.0
  %102 = vmatpush1.msra.mxu0 0.0
  %103 = vmatprep.subr.mxu0 0.0
  %104 = vmatpush1.msra.mxu0 0.0
  %105 = vmatprep.subr.mxu0 0.0
  %106 = vmatpush1.msra.mxu0 0.0
  %107 = vmatprep.subr.mxu0 0.0
  %108 = vmatpush1.msra.mxu0 0.0
  %109 = vmatprep.subr.mxu0 0.0
  %110 = vmatpush1.msra.mxu0 0.0
  %111 = vmatprep.mubr.f32.mxu0 0.0
  %112 = vmatmul.mubr.f32.gmra.mrb[0].mxu0 %v42
  %v113 = vpop.f32.mrb[0].mxu0
  %v114 = vadd.f32 %v38, %v113
  %v115 = vpop.f32.mrb[0].mxu0
  %116 = vmatprep.mubr.f32.mxu0 0.0
  %117 = vmatmul.mubr.f32.gmra.mrb[0].mxu0 %v45
  %v118 = vpop.f32.mrb[0].mxu0
  %v119 = vadd.f32 %v38, %v118
  %v120 = vpop.f32.mrb[0].mxu0
  %121 = vdwg.mxu0
  %v122 = vmax.f32 %v114, 0.0
  %v123 = vmax.f32 %v119, 0.0
  %v124 = vpack.c.bf16 %v123, %v122
  %v125 = vld [vmem:[%s3] sm:$0xf]
  %v126 = vld [vmem:[%s3 + $0x4] sm:$0xf]
  %v127 = vld [vmem:[%s3 + $0x8] sm:$0xf]
  %v128 = vld [vmem:[%s3 + $0xc] sm:$0xf]
  %v129 = vld [vmem:[%s3 + $0x10] sm:$0xf]
  %v130 = vld [vmem:[%s3 + $0x14] sm:$0xf]
  %v131 = vld [vmem:[%s3 + $0x18] sm:$0xf]
  %v132 = vld [vmem:[%s3 + $0x1c] sm:$0xf]
  %v133 = vld [vmem:[%s3 + $0x20] sm:$0xf]
  %v134 = vld [vmem:[%s3 + $0x24] sm:$0xf]
  %v135 = vld [vmem:[%s3 + $0x28] sm:$0xf]
  %v136 = vld [vmem:[%s3 + $0x2c] sm:$0xf]
  %v137 = vld [vmem:[%s3 + $0x30] sm:$0xf]
  %v138 = vld [vmem:[%s3 + $0x34] sm:$0xf]
  %v139 = vld [vmem:[%s3 + $0x38] sm:$0xf]
  %v140 = vld [vmem:[%s3 + $0x3c] sm:$0xf]
  %v141 = vld [vmem:[%s4] sm:$0x1]
  %v143 = vlaneseq
  %v144 = vshrl.u32 %v143, 7
  %v145 = vsub.s32 0, %v144
  %v146 = vrot.slane %v141, %v145
  %v164 = vunpack.c.l.b16 %v125
  %v165 = vunpack.c.l.b16 %v126
  %v166 = vunpack.c.l.b16 %v127
  %v167 = vunpack.c.l.b16 %v128
  %v168 = vunpack.c.l.b16 %v129
  %v169 = vunpack.c.l.b16 %v130
  %v170 = vunpack.c.l.b16 %v131
  %v171 = vunpack.c.l.b16 %v132
  %v172 = vunpack.c.l.b16 %v133
  %v173 = vunpack.c.l.b16 %v134
  %v174 = vunpack.c.l.b16 %v135
  %v175 = vunpack.c.l.b16 %v136
  %v176 = vunpack.c.l.b16 %v137
  %v177 = vunpack.c.l.b16 %v138
  %v178 = vunpack.c.l.b16 %v139
  %v179 = vunpack.c.l.b16 %v140
  %v180 = vpack.c.b16 %v165, %v164
  %v181 = vpack.c.b16 %v167, %v166
  %v182 = vpack.c.b16 %v169, %v168
  %v183 = vpack.c.b16 %v171, %v170
  %v184 = vpack.c.b16 %v173, %v172
  %v185 = vpack.c.b16 %v175, %v174
  %v186 = vpack.c.b16 %v177, %v176
  %v187 = vpack.c.b16 %v179, %v178
  %196 = vmatprep.subr.bf16.mxu0 0
  %197 = vmatpush1.bf16.msra.mxu0 %v180
  %198 = vmatprep.subr.bf16.mxu0 0
  %199 = vmatpush1.bf16.msra.mxu0 %v181
  %200 = vmatprep.subr.bf16.mxu0 0
  %201 = vmatpush1.bf16.msra.mxu0 %v182
  %202 = vmatprep.subr.bf16.mxu0 0
  %203 = vmatpush1.bf16.msra.mxu0 %v183
  %204 = vmatprep.subr.bf16.mxu0 0
  %205 = vmatpush1.bf16.msra.mxu0 %v184
  %206 = vmatprep.subr.bf16.mxu0 0
  %207 = vmatpush1.bf16.msra.mxu0 %v185
  %208 = vmatprep.subr.bf16.mxu0 0
  %209 = vmatpush1.bf16.msra.mxu0 %v186
  %210 = vmatprep.subr.bf16.mxu0 0
  %211 = vmatpush1.bf16.msra.mxu0 %v187
  %212 = vmatprep.subr.bf16.mxu0 0
  %213 = vmatpush1.bf16.msra.mxu0 0
  %214 = vmatprep.subr.bf16.mxu0 0
  %215 = vmatpush1.bf16.msra.mxu0 0
  %216 = vmatprep.subr.bf16.mxu0 0
  %217 = vmatpush1.bf16.msra.mxu0 0
  %218 = vmatprep.subr.bf16.mxu0 0
  %219 = vmatpush1.bf16.msra.mxu0 0
  %220 = vmatprep.subr.bf16.mxu0 0
  %221 = vmatpush1.bf16.msra.mxu0 0
  %222 = vmatprep.subr.bf16.mxu0 0
  %223 = vmatpush1.bf16.msra.mxu0 0
  %224 = vmatprep.subr.bf16.mxu0 0
  %225 = vmatpush1.bf16.msra.mxu0 0
  %226 = vmatprep.subr.bf16.mxu0 0
  %227 = vmatpush1.bf16.msra.mxu0 0
  %228 = vmatprep.mubr.bf16.mxu0 0
  %229 = vmatmul.mubr.bf16.gmra.mrb[0].mxu0 %v124
  %v230 = vpop.f32.mrb[0].mxu0
  %v231 = vadd.f32 %v146, %v230
  %v232 = vpop.f32.mrb[0].mxu0
  %v233 = vpop.f32.mrb[0].mxu0
  %v234 = vadd.f32 %v146, %v233
  %v235 = vpop.f32.mrb[0].mxu0
  %236 = vdwg.mxu0
  %v237 = vmax.f32 %v231, 0.0
  %v238 = vmax.f32 %v234, 0.0
  %v239 = vld [vmem:[%s5] sm:$0x1]
  %v241 = vlaneseq
  %v242 = vshrl.u32 %v241, 7
  %v243 = vsub.s32 0, %v242
  %v244 = vrot.slane %v239, %v243
  %v246 = vmul.f32 %v237, %v244
  %v247 = vmul.f32 %v238, %v244
  %vm248 = vcmask 523264
  %v249 = vsel %vm248, %v246, 0.0
  %250 = vadd.xlane.f32.xlu0 %v249
  %v251 = vpop.xlane.xlu0 %250
  %v252 = vsel %vm248, %v247, 0.0
  %253 = vadd.xlane.f32.xlu0 %v252
  %v254 = vpop.xlane.xlu0 %253
  %v255 = vld [vmem:[#allocation2] sm:$0x1]
  %v257 = vlaneseq
  %v258 = vshrl.u32 %v257, 7
  %v259 = vsub.s32 0, %v258
  %v260 = vrot.slane %v255, %v259
  %v262 = vadd.f32 %v251, %v260
  %v263 = vadd.f32 %v254, %v260
  %vm264 = vcmask 7168
  %265 = vst.msk [vmem:[%s7] sm:$0xff] %vm264, %v262
  %266 = vst.msk [vmem:[%s7 + $0x8] sm:$0xff] %vm264, %v263
  // Predicated region
  $region30: #{tpu_custom_call.1} parent=0 // pred_check
    _
  $region31: #{tpu_custom_call.1} parent=0 // pred_check_branch
    %268 = sbr.rel (0) target = $region33
  $region32: #{tpu_custom_call.1} parent=0 // pred_region
    _
  $region33: #{tpu_custom_call.1} parent=0 // pred_fallthru
    _
  // Predicated region
  $region34: #{tpu_custom_call.1} parent=0 // pred_check
    _
  $region35: #{tpu_custom_call.1} parent=0 // pred_check_branch
    %270 = sbr.rel (0) target = $region37
  $region36: #{tpu_custom_call.1} parent=0 // pred_region
    _
  $region37: #{tpu_custom_call.1} parent=0 // pred_fallthru
    _

</llo_original>
